<compile_context>
chip_gen: v6e
topology: v6e:2x2x1
jax: 0.10.0
libtpu: 0.0.40
codegen_flags: <defaults>
</compile_context>

<pallas_src>
import numpy as np
import jax
import jax.numpy as jnp
from jax.experimental import pallas as pl
from jax.experimental.pallas import tpu as pltpu

# ---- hyperparameters (module __init__) ----
N_HARMONICS = 16
EMBEDDING_SIZE = 64
TMAX = 1000.0
INPUT_SIZE = 1

# ---- small example shapes ----
BATCH = 2
SEQ = 8


def timefilm_kernel(xt_ref, arb_ref, wproj_ref, bproj_ref, wab_ref, o_ref):
    # xt_ref:    (R, Din+1)   packed [x | t] rows
    # arb_ref:   (2, 2H)      row 0 = [ar, -ar], row 1 = [0..0, pi/2..pi/2]
    # wproj_ref: (Din, E)
    # bproj_ref: (1, E)
    # wab_ref:   (2H, 2E)     [alpha_W | beta_W] fused along E
    # o_ref:     (R, E)
    E = o_ref.shape[-1]
    Din = wproj_ref.shape[0]

    xt = xt_ref[...]                                   # (R, Din+1)
    x = xt[:, :Din]                                    # (R, Din)
    t = xt[:, Din:Din + 1]                             # (R, 1)

    # Single fused EUP pass: sin(t*ar) for the first H lanes,
    # sin(-t*ar + pi/2) = sin(pi/2 - t*ar) for the last H lanes (matches reference).
    sincos = jnp.sin(t * arb_ref[0:1, :] + arb_ref[1:2, :])      # (R, 2H)

    # Linear projection of x.  Din == 1 -> VPU broadcast (no K=1 MXU matmul).
    if Din == 1:
        proj = x * wproj_ref[...] + bproj_ref[...]               # (R,1)*(1,E)+(1,E)
    else:
        proj = jnp.dot(x, wproj_ref[...],
                       preferred_element_type=jnp.float32) + bproj_ref[...]

    # Single fused 128-lane MXU matmul for both FiLM weight sets.
    ab = jnp.dot(sincos, wab_ref[...], preferred_element_type=jnp.float32)  # (R, 2E)
    alpha = ab[:, :E]
    beta = ab[:, E:]

    o_ref[...] = (proj * alpha + beta).astype(o_ref.dtype)


def make_timefilm_params(w_proj, b_proj, alpha_w, beta_w, *, tmax=TMAX):
    """One-time parameter prep (hoisted out of the per-call wrapper)."""
    Din, E = w_proj.shape
    H = alpha_w.shape[0] // 2
    ar = (2.0 * np.pi / tmax) * jnp.arange(H, dtype=jnp.float32)
    ar2 = jnp.concatenate([ar, -ar])                                   # (2H,)
    bias = jnp.concatenate([jnp.zeros((H,), jnp.float32),
                            jnp.full((H,), np.pi / 2, dtype=jnp.float32)])
    arb = jnp.stack([ar2, bias], axis=0)                               # (2, 2H)
    w_ab = jnp.concatenate([alpha_w, beta_w], axis=1).astype(jnp.float32)  # (2H, 2E)
    return dict(
        arb=arb,
        w_proj=w_proj.astype(jnp.float32),
        b_proj=b_proj.reshape(1, E).astype(jnp.float32),
        w_ab=w_ab,
    )


def _round_up(v, m):
    return ((v + m - 1) // m) * m


def timefilm_forward(x, t, params, *, row_block=4096):
    B, S, Din = x.shape
    E = params["w_proj"].shape[1]
    H2 = params["arb"].shape[1]
    BS = B * S

    # Pack [x | t] into a single (BS, Din+1) input -> one DMA / VMEM tile per step.
    xt = jnp.concatenate(
        [x.reshape(BS, Din), t.reshape(BS, 1)], axis=-1).astype(jnp.float32)

    # Row-block selection:
    #   * >= 2 grid steps whenever possible so the "parallel" axis shards across
    #     v7x's two TensorCores;
    #   * capped at row_block (default 4096: ~1 MB output blocks and ~7 MB of
    #     in-kernel temporaries, inside every generation's scoped-VMEM default).
    rb = min(row_block, max(8, _round_up(pl.cdiv(BS, 2), 8)))
    num_blocks = pl.cdiv(BS, rb)
    BS_pad = num_blocks * rb
    if BS_pad != BS:
        xt = jnp.pad(xt, ((0, BS_pad - BS), (0, 0)))

    out2 = pl.pallas_call(
        timefilm_kernel,
        out_shape=jax.ShapeDtypeStruct((BS_pad, E), jnp.float32),
        grid_spec=pltpu.PrefetchScalarGridSpec(
            num_scalar_prefetch=0,
            grid=(num_blocks,),
            in_specs=[
                pl.BlockSpec((rb, Din + 1), lambda i: (i, 0)),
                pl.BlockSpec((2, H2), lambda i: (0, 0)),
                pl.BlockSpec((Din, E), lambda i: (0, 0)),
                pl.BlockSpec((1, E), lambda i: (0, 0)),
                pl.BlockSpec((H2, 2 * E), lambda i: (0, 0)),
            ],
            out_specs=pl.BlockSpec((rb, E), lambda i: (i, 0)),
        ),
        compiler_params=pltpu.CompilerParams(
            dimension_semantics=("parallel",)),
    )(xt, params["arb"], params["w_proj"], params["b_proj"], params["w_ab"])

    if BS_pad != BS:
        out2 = out2[:BS]
    return out2.reshape(B, S, E)


def timefilm_reference(x, t, w_proj, b_proj, alpha_w, beta_w):
    # plain-JAX reference mirroring the PyTorch forward
    ar = (2.0 * np.pi / TMAX) * jnp.arange(N_HARMONICS, dtype=jnp.float32)[None, None, :]
    ts = ar * t                                                         # (B, S, H)
    sincos = jnp.sin(jnp.concatenate([ts, np.pi / 2 - ts], axis=-1))    # (B, S, 2H)
    proj = jnp.einsum('bsi,ie->bse', x, w_proj) + b_proj
    alpha = jnp.einsum('bsh,he->bse', sincos, alpha_w)
    beta = jnp.einsum('bsh,he->bse', sincos, beta_w)
    return proj * alpha + beta


if __name__ == "__main__":
    key = jax.random.PRNGKey(0)
    k1, k2, k3, k4, k5, k6 = jax.random.split(key, 6)

    # deterministic synthetic parameters (shapes from the module __init__)
    alpha_w = jax.random.normal(k1, (2 * N_HARMONICS, EMBEDDING_SIZE), dtype=jnp.float32)
    beta_w = jax.random.normal(k2, (2 * N_HARMONICS, EMBEDDING_SIZE), dtype=jnp.float32)
    # nn.Linear(input_size, embedding_size): weight (E, Din) -> stored transposed (Din, E)
    w_proj = jax.random.normal(k3, (INPUT_SIZE, EMBEDDING_SIZE), dtype=jnp.float32) * 0.5
    b_proj = jax.random.normal(k4, (EMBEDDING_SIZE,), dtype=jnp.float32) * 0.1

    # inputs
    x = jax.random.normal(k5, (BATCH, SEQ, INPUT_SIZE), dtype=jnp.float32)
    t = jax.random.uniform(k6, (BATCH, SEQ, 1), dtype=jnp.float32) * 500.0

    params = make_timefilm_params(w_proj, b_proj, alpha_w, beta_w)
    out = timefilm_forward(x, t, params)
    out = jax.block_until_ready(out)

    ref = timefilm_reference(x, t, w_proj, b_proj, alpha_w, beta_w)
    np.testing.assert_allclose(np.asarray(out), np.asarray(ref), rtol=1e-5, atol=1e-5)

    print("KERNEL_OK")
</pallas_src>

<mosaic_0001>
module attributes {stable_mosaic.version = 11 : i64} {
  func.func @timefilm_kernel(%arg0: i32, %arg1: memref<8x2xf32, #tpu.memory_space<vmem>>, %arg2: memref<2x32xf32, #tpu.memory_space<vmem>>, %arg3: memref<1x64xf32, #tpu.memory_space<vmem>>, %arg4: memref<1x64xf32, #tpu.memory_space<vmem>>, %arg5: memref<32x128xf32, #tpu.memory_space<vmem>>, %arg6: memref<8x64xf32, #tpu.memory_space<vmem>>) attributes {dimension_semantics = [#tpu.dimension_semantics<parallel>], iteration_bounds = array<i64: 2>, scalar_prefetch = 0 : i64, scratch_operands = 0 : i64, tpu.core_type = #tpu.core_type<tc>, window_params = [{transform_indices = @transform_0, window_bounds = array<i64: 8, 2>}, {pipeline_mode = #tpu.pipeline_mode<synchronous>, transform_indices = @transform_1, window_bounds = array<i64: 2, 32>}, {pipeline_mode = #tpu.pipeline_mode<synchronous>, transform_indices = @transform_2, window_bounds = array<i64: 1, 64>}, {pipeline_mode = #tpu.pipeline_mode<synchronous>, transform_indices = @transform_3, window_bounds = array<i64: 1, 64>}, {pipeline_mode = #tpu.pipeline_mode<synchronous>, transform_indices = @transform_4, window_bounds = array<i64: 32, 128>}, {transform_indices = @transform_5, window_bounds = array<i64: 8, 64>}]} {
    %c0 = arith.constant 0 : index
    %c0_0 = arith.constant 0 : index
    %0 = vector.load %arg1[%c0, %c0_0] : memref<8x2xf32, #tpu.memory_space<vmem>>, vector<8x2xf32>
    %1 = vector.extract_strided_slice %0 {offsets = [0, 0], sizes = [8, 1], strides = [1, 1]} : vector<8x2xf32> to vector<8x1xf32>
    %2 = vector.extract_strided_slice %0 {offsets = [0, 1], sizes = [8, 1], strides = [1, 1]} : vector<8x2xf32> to vector<8x1xf32>
    %c0_1 = arith.constant 0 : index
    %c0_2 = arith.constant 0 : index
    %3 = vector.load %arg2[%c0_1, %c0_2] : memref<2x32xf32, #tpu.memory_space<vmem>>, vector<1x32xf32>
    %4 = vector.broadcast %2 : vector<8x1xf32> to vector<8x32xf32>
    %5 = vector.broadcast %3 : vector<1x32xf32> to vector<8x32xf32>
    %6 = arith.mulf %4, %5 : vector<8x32xf32>
    %c1 = arith.constant 1 : index
    %c0_3 = arith.constant 0 : index
    %7 = vector.load %arg2[%c1, %c0_3] : memref<2x32xf32, #tpu.memory_space<vmem>>, vector<1x32xf32>
    %8 = vector.broadcast %7 : vector<1x32xf32> to vector<8x32xf32>
    %9 = arith.addf %6, %8 : vector<8x32xf32>
    %10 = math.sin %9 : vector<8x32xf32>
    %c0_4 = arith.constant 0 : index
    %c0_5 = arith.constant 0 : index
    %11 = vector.load %arg3[%c0_4, %c0_5] : memref<1x64xf32, #tpu.memory_space<vmem>>, vector<1x64xf32>
    %12 = vector.broadcast %1 : vector<8x1xf32> to vector<8x64xf32>
    %13 = vector.broadcast %11 : vector<1x64xf32> to vector<8x64xf32>
    %14 = arith.mulf %12, %13 : vector<8x64xf32>
    %c0_6 = arith.constant 0 : index
    %c0_7 = arith.constant 0 : index
    %15 = vector.load %arg4[%c0_6, %c0_7] : memref<1x64xf32, #tpu.memory_space<vmem>>, vector<1x64xf32>
    %16 = vector.broadcast %15 : vector<1x64xf32> to vector<8x64xf32>
    %17 = arith.addf %14, %16 : vector<8x64xf32>
    %c0_8 = arith.constant 0 : index
    %c0_9 = arith.constant 0 : index
    %18 = vector.load %arg5[%c0_8, %c0_9] : memref<32x128xf32, #tpu.memory_space<vmem>>, vector<32x128xf32>
    %cst = arith.constant dense<0.000000e+00> : vector<8x128xf32>
    %19 = tpu.matmul %10, %18, %cst {dimension_numbers = #tpu.dot_dimension_numbers<[1], [0], [0], [1], [0, 0, 1, 1], [], []>} : vector<8x32xf32>, vector<32x128xf32>, vector<8x128xf32> -> vector<8x128xf32>
    %20 = vector.extract_strided_slice %19 {offsets = [0, 0], sizes = [8, 64], strides = [1, 1]} : vector<8x128xf32> to vector<8x64xf32>
    %21 = vector.extract_strided_slice %19 {offsets = [0, 64], sizes = [8, 64], strides = [1, 1]} : vector<8x128xf32> to vector<8x64xf32>
    %22 = arith.mulf %17, %20 : vector<8x64xf32>
    %23 = arith.addf %22, %21 : vector<8x64xf32>
    %c0_10 = arith.constant 0 : index
    %c0_11 = arith.constant 0 : index
    %24 = vector.load %arg6[%c0_10, %c0_11] : memref<8x64xf32, #tpu.memory_space<vmem>>, vector<8x64xf32>
    tpu.vector_store %arg6[%c0_10, %c0_11], %23 {strides = array<i32>} : memref<8x64xf32, #tpu.memory_space<vmem>>, vector<8x64xf32>,
    return
  }
  func.func @transform_0(%arg0: i32) -> (i32, i32) {
    %c0_i32 = arith.constant 0 : i32
    %c0_i32_0 = arith.constant 0 : i32
    return %arg0, %c0_i32 : i32, i32
  }
  func.func @transform_1(%arg0: i32) -> (i32, i32) {
    %c0_i32 = arith.constant 0 : i32
    %c0_i32_0 = arith.constant 0 : i32
    %c0_i32_1 = arith.constant 0 : i32
    return %c0_i32, %c0_i32_0 : i32, i32
  }
  func.func @transform_2(%arg0: i32) -> (i32, i32) {
    %c0_i32 = arith.constant 0 : i32
    %c0_i32_0 = arith.constant 0 : i32
    %c0_i32_1 = arith.constant 0 : i32
    return %c0_i32, %c0_i32_0 : i32, i32
  }
  func.func @transform_3(%arg0: i32) -> (i32, i32) {
    %c0_i32 = arith.constant 0 : i32
    %c0_i32_0 = arith.constant 0 : i32
    %c0_i32_1 = arith.constant 0 : i32
    return %c0_i32, %c0_i32_0 : i32, i32
  }
  func.func @transform_4(%arg0: i32) -> (i32, i32) {
    %c0_i32 = arith.constant 0 : i32
    %c0_i32_0 = arith.constant 0 : i32
    %c0_i32_1 = arith.constant 0 : i32
    return %c0_i32, %c0_i32_0 : i32, i32
  }
  func.func @transform_5(%arg0: i32) -> (i32, i32) {
    %c0_i32 = arith.constant 0 : i32
    %c0_i32_0 = arith.constant 0 : i32
    return %arg0, %c0_i32 : i32, i32
  }
}

</mosaic_0001>

<llo_original>
// kernel: tpu_custom_call.1
$region0: #{tpu_custom_call.1}
  #allocation0 [shape = 'u32[]', space=smem, size = 0x4, offset = 0x4, fixed_abs, tag = 'smem constant byte address 0x4 - core index']
  #allocation1 [shape = 'u32[144,128]{1,0:T(1,128)}', space=vmem, size = 0x12000, scoped, tag = 'internal scratch']
  %s0 = inlined_call_operand.vmem [shape: f32[16,2], index: 0, kind: input, shape index: {}]
  %s1 = inlined_call_operand.vmem [shape: f32[2,32], index: 1, kind: input, shape index: {}]
  %s2 = inlined_call_operand.vmem [shape: f32[1,64], index: 2, kind: input, shape index: {}]
  %s3 = inlined_call_operand.vmem [shape: f32[1,64], index: 3, kind: input, shape index: {}]
  %s4 = inlined_call_operand.hbm [shape: f32[32,128], index: 4, kind: input, shape index: {}]
  %s5 = inlined_call_operand.hbm [shape: f32[16,64], index: 5, kind: output, shape index: {}]
  %s6 = sld [smem:[#allocation0]]
  $region57: #{tpu_custom_call.1} parent=0
    _
  %s8 = ssub.s32 1, %s6
  %s9 = scalar_select 0, %s8, %s6
  $region1: #{tpu_custom_call.1} parent=0
    #allocation2 [shape = 'u8[16384]{0}', space=vmem, size = 0x4000, scoped, tag = 'input window, operand 4, single buffered']
    #allocation3 [shape = 's32[2]{0}', space=sflag, size = 0x8, scoped, tag = 'scoped memory for tpu_custom_call.1']
    #allocation4 [shape = 's32[2]{0}', space=sflag, size = 0x8, scoped, tag = 'scoped memory for tpu_custom_call.1']
    #allocation5 [shape = 'u8[8192]{0}', space=vmem, size = 0x2000, scoped, tag = 'output window, operand 0']
    %10 = vsyncpa [#allocation3], 0
    %11 = vsyncpa [#allocation4], 0
    %s12 = scalar_lea.sflag [#allocation4], 1
    %13 = vsyncpa %s12, 0
    loop: start=0, step=1, limit=4
    $region2: #{tpu_custom_call.1} parent=1 // loop_pre_header
      _
    $region3: #{tpu_custom_call.1} parent=1 // loop_header
      %s15 = sphi 0, %s19
      %p16 = scmp.ge.s32.totalorder %s15, 4
      %s25 = sphi 0, %s27
      %s28 = sphi 0, %s25
      %s29 = sphi 0, %s28
      %s45 = sphi 0, %s29
      %s49 = sphi 0, %s49
      %s51 = sphi 0, %s49
      %s52 = sphi 0, %s51
      %s66 = sphi 0, %s52
      %s70 = sphi 0, %s70
      %s72 = sphi 0, %s70
      %s73 = sphi 0, %s72
      %s87 = sphi 0, %s73
      %s91 = sphi 0, %s91
      %s93 = sphi 0, %s91
      %s94 = sphi 0, %s93
      %s108 = sphi 0, %s94
      %s112 = sphi 0, %s112
      %s114 = sphi 0, %s112
      %s115 = sphi 0, %s114
      %s129 = sphi 0, %s115
      %s135 = sphi 0, %s137
      %s138 = sphi 0, %s135
      %s139 = sphi 0, %s138
      %s155 = sphi 0, %s139
    $region4: #{tpu_custom_call.1} parent=1 // loop_header_branch
      %18 = sbr.rel (%p16) target = $region8
    $region5: #{tpu_custom_call.1} parent=1 // loop_body
      %s20 = ssub.s32 %s15, 1
      %s21 = ssub.s32 %s15, 2
      %s22 = sadd.s32 %s15, 1
      %s23 = ssub.s32 %s15, %s22
      %p24 = scmp.eq.s32.totalorder %s23, 0
      %s26 = sadd.s32 %s25, 1
      %s27 = scalar_select %p24, %s25, %s26
      %p30 = pneg %p24
      %p31 = scmp.eq.s32.totalorder %s15, 1
      %p32 = por %p30, %p31
      %p33 = scmp.ne.s32.totalorder %s25, %s28
      %p34 = scmp.eq.s32.totalorder %s15, 0
      %p35 = por %p33, %p34
      %p36 = scmp.ne.s32.totalorder %s25, %s28
      %p37 = scmp.eq.s32.totalorder %s20, 1
      %p38 = por %p36, %p37
      %p39 = scmp.ne.s32.totalorder %s28, %s29
      %p40 = scmp.eq.s32.totalorder %s20, 0
      %p41 = por %p39, %p40
      %p42 = scmp.ne.s32.totalorder %s28, %s29
      %p43 = scmp.eq.s32.totalorder %s21, 1
      %p44 = por %p42, %p43
      %p46 = scmp.ne.s32.totalorder %s29, %s45
      %p47 = scmp.eq.s32.totalorder %s21, 0
      %p48 = por %p46, %p47
      %s50 = sadd.s32 %s49, 1
      %p53 = scmp.eq.s32.totalorder %s15, 1
      %p54 = scmp.ne.s32.totalorder %s49, %s51
      %p55 = scmp.eq.s32.totalorder %s15, 0
      %p56 = por %p54, %p55
      %p57 = scmp.ne.s32.totalorder %s49, %s51
      %p58 = scmp.eq.s32.totalorder %s20, 1
      %p59 = por %p57, %p58
      %p60 = scmp.ne.s32.totalorder %s51, %s52
      %p61 = scmp.eq.s32.totalorder %s20, 0
      %p62 = por %p60, %p61
      %p63 = scmp.ne.s32.totalorder %s51, %s52
      %p64 = scmp.eq.s32.totalorder %s21, 1
      %p65 = por %p63, %p64
      %p67 = scmp.ne.s32.totalorder %s52, %s66
      %p68 = scmp.eq.s32.totalorder %s21, 0
      %p69 = por %p67, %p68
      %s71 = sadd.s32 %s70, 1
      %p74 = scmp.eq.s32.totalorder %s15, 1
      %p75 = scmp.ne.s32.totalorder %s70, %s72
      %p76 = scmp.eq.s32.totalorder %s15, 0
      %p77 = por %p75, %p76
      %p78 = scmp.ne.s32.totalorder %s70, %s72
      %p79 = scmp.eq.s32.totalorder %s20, 1
      %p80 = por %p78, %p79
      %p81 = scmp.ne.s32.totalorder %s72, %s73
      %p82 = scmp.eq.s32.totalorder %s20, 0
      %p83 = por %p81, %p82
      %p84 = scmp.ne.s32.totalorder %s72, %s73
      %p85 = scmp.eq.s32.totalorder %s21, 1
      %p86 = por %p84, %p85
      %p88 = scmp.ne.s32.totalorder %s73, %s87
      %p89 = scmp.eq.s32.totalorder %s21, 0
      %p90 = por %p88, %p89
      %s92 = sadd.s32 %s91, 1
      %p95 = scmp.eq.s32.totalorder %s15, 1
      %p96 = scmp.ne.s32.totalorder %s91, %s93
      %p97 = scmp.eq.s32.totalorder %s15, 0
      %p98 = por %p96, %p97
      %p99 = scmp.ne.s32.totalorder %s91, %s93
      %p100 = scmp.eq.s32.totalorder %s20, 1
      %p101 = por %p99, %p100
      %p102 = scmp.ne.s32.totalorder %s93, %s94
      %p103 = scmp.eq.s32.totalorder %s20, 0
      %p104 = por %p102, %p103
      %p105 = scmp.ne.s32.totalorder %s93, %s94
      %p106 = scmp.eq.s32.totalorder %s21, 1
      %p107 = por %p105, %p106
      %p109 = scmp.ne.s32.totalorder %s94, %s108
      %p110 = scmp.eq.s32.totalorder %s21, 0
      %p111 = por %p109, %p110
      %s113 = sadd.s32 %s112, 1
      %p116 = scmp.eq.s32.totalorder %s15, 1
      %p117 = scmp.ne.s32.totalorder %s112, %s114
      %p118 = scmp.eq.s32.totalorder %s15, 0
      %p119 = por %p117, %p118
      %p120 = scmp.ne.s32.totalorder %s112, %s114
      %p121 = scmp.eq.s32.totalorder %s20, 1
      %p122 = por %p120, %p121
      %p123 = scmp.ne.s32.totalorder %s114, %s115
      %p124 = scmp.eq.s32.totalorder %s20, 0
      %p125 = por %p123, %p124
      %p126 = scmp.ne.s32.totalorder %s114, %s115
      %p127 = scmp.eq.s32.totalorder %s21, 1
      %p128 = por %p126, %p127
      %p130 = scmp.ne.s32.totalorder %s115, %s129
      %p131 = scmp.eq.s32.totalorder %s21, 0
      %p132 = por %p130, %p131
      %s133 = ssub.s32 %s15, %s22
      %p134 = scmp.eq.s32.totalorder %s133, 0
      %s136 = sadd.s32 %s135, 1
      %s137 = scalar_select %p134, %s135, %s136
      %p140 = pneg %p134
      %p141 = scmp.eq.s32.totalorder %s15, 1
      %p142 = por %p140, %p141
      %p143 = scmp.ne.s32.totalorder %s135, %s138
      %p144 = scmp.eq.s32.totalorder %s15, 0
      %p145 = por %p143, %p144
      %p146 = scmp.ne.s32.totalorder %s135, %s138
      %p147 = scmp.eq.s32.totalorder %s20, 1
      %p148 = por %p146, %p147
      %p149 = scmp.ne.s32.totalorder %s138, %s139
      %p150 = scmp.eq.s32.totalorder %s20, 0
      %p151 = por %p149, %p150
      %p152 = scmp.ne.s32.totalorder %s138, %s139
      %p153 = scmp.eq.s32.totalorder %s21, 1
      %p154 = por %p152, %p153
      %p156 = scmp.ne.s32.totalorder %s139, %s155
      %p157 = scmp.eq.s32.totalorder %s21, 0
      %p158 = por %p156, %p157
      %p159 = scmp.le.s32.totalorder 1, %s15
      %p160 = scmp.lt.s32.totalorder %s15, 3
      %p161 = pnand %p159, %p160
      %p162 = pneg %p161
      // Predicated region
      $region9: #{tpu_custom_call.1} parent=5 // pred_check
        _
      $region10: #{tpu_custom_call.1} parent=5 // pred_check_branch
        %164 = sbr.rel (%p161) target = $region12
      $region11: #{tpu_custom_call.1} parent=5 // pred_region
        %s165 = ssub.s32 %s15, 1
        // Predicated region
        $region13: #{tpu_custom_call.1} parent=11 // pred_check
          %p166 = pneg %p62
        $region14: #{tpu_custom_call.1} parent=11 // pred_check_branch
          %168 = sbr.rel (%p166) target = $region16
        $region15: #{tpu_custom_call.1} parent=11 // pred_region
          _
        $region16: #{tpu_custom_call.1} parent=11 // pred_fallthru
          _
        // Predicated region
        $region17: #{tpu_custom_call.1} parent=11 // pred_check
          %p169 = pneg %p83
        $region18: #{tpu_custom_call.1} parent=11 // pred_check_branch
          %171 = sbr.rel (%p169) target = $region20
        $region19: #{tpu_custom_call.1} parent=11 // pred_region
          _
        $region20: #{tpu_custom_call.1} parent=11 // pred_fallthru
          _
        // Predicated region
        $region21: #{tpu_custom_call.1} parent=11 // pred_check
          %p172 = pneg %p104
        $region22: #{tpu_custom_call.1} parent=11 // pred_check_branch
          %174 = sbr.rel (%p172) target = $region24
        $region23: #{tpu_custom_call.1} parent=11 // pred_region
          _
        $region24: #{tpu_custom_call.1} parent=11 // pred_fallthru
          _
        // Predicated region
        $region25: #{tpu_custom_call.1} parent=11 // pred_check
          %p175 = pneg %p125
        $region26: #{tpu_custom_call.1} parent=11 // pred_check_branch
          %177 = sbr.rel (%p175) target = $region28
        $region27: #{tpu_custom_call.1} parent=11 // pred_region
          %s179 = ssub.s32 512, 512
          %180 = vsyncadd [#allocation3], %s179
          %s181 = sshll.u32 [#allocation2], 4
          %s182 = int_to_ptr.vmem [resolvable:$true] %s181
          %187 = dma.hbm_to_vmem [thread:$0]  %s4, 512, %s182, [#allocation3], 128, 128, 8
        $region28: #{tpu_custom_call.1} parent=11 // pred_fallthru
          _
      $region12: #{tpu_custom_call.1} parent=5 // pred_fallthru
        _
      %p188 = scmp.lt.s32.totalorder %s15, 2
      // Predicated region
      $region29: #{tpu_custom_call.1} parent=5 // pred_check
        %p189 = pneg %p188
      $region30: #{tpu_custom_call.1} parent=5 // pred_check_branch
        %191 = sbr.rel (%p189) target = $region32
      $region31: #{tpu_custom_call.1} parent=5 // pred_region
        // Predicated region
        $region33: #{tpu_custom_call.1} parent=31 // pred_check
          %p192 = pneg %p35
        $region34: #{tpu_custom_call.1} parent=31 // pred_check_branch
          %194 = sbr.rel (%p192) target = $region36
        $region35: #{tpu_custom_call.1} parent=31 // pred_region
          %p195 = scmp.lt.s32.totalorder %s15, 1
          %s196 = scalar_select %p195, %s15, 1
          %s197 = smul.addr %s196, 8
          %s198 = scalar_lea.vmem %s0, %s197
        $region36: #{tpu_custom_call.1} parent=31 // pred_fallthru
          _
      $region32: #{tpu_custom_call.1} parent=5 // pred_fallthru
        _
      %p199 = scmp.le.s32.totalorder 1, %s15
      %p200 = scmp.lt.s32.totalorder %s15, 3
      %p201 = pnand %p199, %p200
      %p202 = pneg %p201
      // Predicated region
      $region37: #{tpu_custom_call.1} parent=5 // pred_check
        _
      $region38: #{tpu_custom_call.1} parent=5 // pred_check_branch
        %204 = sbr.rel (%p201) target = $region40
      $region39: #{tpu_custom_call.1} parent=5 // pred_region
        %s205 = ssub.s32 %s15, 1
        // Predicated region
        $region41: #{tpu_custom_call.1} parent=39 // pred_check
          %p206 = pneg %p125
        $region42: #{tpu_custom_call.1} parent=39 // pred_check_branch
          %208 = sbr.rel (%p206) target = $region44
        $region43: #{tpu_custom_call.1} parent=39 // pred_region
          %209 = dma.done [#allocation3], 512
        $region44: #{tpu_custom_call.1} parent=39 // pred_fallthru
          _
        %p210 = scmp.lt.s32.totalorder %s20, 1
        %s211 = scalar_select %p210, %s20, 1
        %s212 = smul.addr %s211, 8
        %s213 = scalar_lea.vmem %s0, %s212
        %p214 = pneg %p41
        %p215 = pneg %p38
        %p216 = pneg %p62
        %p217 = pneg %p59
        %p218 = pneg %p83
        %p219 = pneg %p80
        %p220 = pneg %p104
        %p221 = pneg %p101
        %p222 = pneg %p125
        %p223 = pneg %p122
        %p224 = pneg %p151
        %p225 = pneg %p148
        %s226 = sand.u32 %s138, 1
        %s227 = scalar_lea.sflag [#allocation4], %s226
        %s228 = sand.u32 %s138, 1
        %s229 = smul.addr %s228, 8
        %s230 = scalar_lea.vmem [#allocation5], %s229
        %p231 = scmp.lt.s32.totalorder %s20, 1
        %s232 = scalar_select %p231, %s20, 1
        %s233 = smul.addr %s232, 8
        %s234 = scalar_lea.vmem %s0, %s233
        %v235 = vld [vmem:[%s234] sm:$0xff]
        %v236 = vld [vmem:[%s1] sm:$0x1]
        %238 = vset.pattern.permute.xlu0 1
        %239 = vperm.xlu0 %238, %v235
        %v240 = vpop.permute.xlu0 %239
        %v242 = vlaneseq
        %v243 = vshrl.u32 %v242, 7
        %v244 = vsub.s32 0, %v243
        %v245 = vrot.slane %v236, %v244
        %v246 = vmul.f32 %v240, %v245
        %v247 = vld [vmem:[%s1 + $0x1] sm:$0x1]
        %v248 = vlaneseq
        %v249 = vshrl.u32 %v248, 7
        %v250 = vsub.s32 0, %v249
        %v251 = vrot.slane %v247, %v250
        %v252 = vadd.f32 %v246, %v251
        %v253 = vand.u32 2147483647, %v252
        %vm254 = vcmp.le.f32.partialorder %v253, 0.7853982
        %vm255 = vcmp.lt.s32.totalorder %v252, 0
        %v256 = vand.u32 %v252, 2139095040
        %v257 = vshrl.u32 %v256, 23
        %v258 = vsub.s32 %v257, 127
        %v259 = vand.u32 2147483647, %v252
        %v260 = vand.u32 %v259, 8388607
        %v261 = vor.u32 %v260, 8388608
        %v262 = vsub.s32 0, %v261
        %v263 = vadd.s32 %v258, 1
        %vm264 = vcmp.gt.s32.totalorder %v263, 0
        %v265 = vsel %vm264, %v263, 0
        %v266 = vshrl.u32 %v265, 5
        %v267 = vand.u32 %v265, 31
        %v268 = vsub.s32 32, %v267
        %v269 = vshrl.u32 683565275, %v268
        %v270 = vshll.u32 683565275, %v267
        %v271 = vshrl.u32 2475754826, %v268
        %v272 = vor.u32 %v270, %v271
        %v273 = vshll.u32 2475754826, %v267
        %v274 = vshrl.u32 2131351028, %v268
        %v275 = vor.u32 %v273, %v274
        %v276 = vshll.u32 2131351028, %v267
        %v277 = vshrl.u32 2102212464, %v268
        %v278 = vor.u32 %v276, %v277
        %v279 = vshll.u32 2102212464, %v267
        %v280 = vshrl.u32 920167782, %v268
        %v281 = vor.u32 %v279, %v280
        %v282 = vshll.u32 920167782, %v267
        %v283 = vshrl.u32 1326507024, %v268
        %v284 = vor.u32 %v282, %v283
        %vm285 = vcmp.lt.s32.totalorder %v266, 1
        %vm286 = vcmp.lt.s32.totalorder %v266, 2
        %vm287 = vcmp.lt.s32.totalorder %v266, 3
        %vm288 = vcmp.lt.s32.totalorder %v266, 4
        %v289 = vsel %vm285, %v269, %v272
        %v290 = vsel %vm288, %v278, 2102212464
        %v291 = vsel %vm287, %v275, %v290
        %v292 = vsel %vm286, %v289, %v291
        %v293 = vsel %vm285, %v272, %v275
        %v294 = vsel %vm288, %v281, 920167782
        %v295 = vsel %vm287, %v278, %v294
        %v296 = vsel %vm286, %v293, %v295
        %v297 = vsel %vm285, %v275, %v278
        %v298 = vsel %vm288, %v284, 1326507024
        %v299 = vsel %vm287, %v281, %v298
        %v300 = vsel %vm286, %v297, %v299
        %v301 = vshll.u32 %v261, 8
        %v302 = vmul.u32.u64.compose %v301, %v300
        %v303 = vextract.low.u32 %v302
        %v304 = vextract.high.u32 %v302
        %v305 = vmul.u32.u64.compose %v301, %v296
        %v306 = vextract.low.u32 %v305
        %v307 = vextract.high.u32 %v305
        %v308 = vmul.u32 %v301, %v292
        %v309 = vadd.s32 %v304, %v306
        %vm310 = vc.u32 %v304, %v306
        %v311 = vadd.s32 %v307, 1
        %v312 = vsel %vm310, %v311, %v307
        %v313 = vadd.s32 %v308, %v312
        %v314 = vadd.s32 %v313, 536870912
        %v315 = vshrl.u32 %v314, 30
        %v316 = vshll.u32 %v315, 30
        %v317 = vsub.s32 %v313, %v316
        %vm318 = vcmp.lt.s32.totalorder %v317, 0
        %v319 = vsub.s32 0, %v317
        %v320 = vsel %vm318, %v319, %v317
        %v321 = vclz %v320
        %v322 = vsub.s32 %v321, 2
        %vm323 = vcmp.gt.s32.totalorder 0, %v322
        %v324 = vsel %vm323, 0, %v322
        %v325 = vsub.s32 32, %v324
        %v326 = vshll.u32 %v317, %v324
        %v327 = vshrl.u32 %v309, %v325
        %v328 = vor.u32 %v326, %v327
        %v329 = vsub.s32 4294967266, %v324
        %v330 = vadd.s32 %v329, 127
        %v331 = vshll.u32 %v330, 23
        %v332 = vor.u32 4788187, %v331
        %v333 = vand.u32 2147483647, %v332
        %v335 = vcvt.s32.f32 %v328
        %v336 = vmul.f32 %v335, %v333
        %v337 = vxor.u32 %v336, 2147483648
        %v338 = vsel %vm255, %v337, %v336
        %v339 = vsub.s32 4, %v315
        %v340 = vsel %vm255, %v339, %v315
        %v341 = vsel %vm254, %v252, %v338
        %v342 = vsel %vm254, 0, %v340
        %v343 = vcosq.f32.pop %v341
        %v344 = vsinq.f32.pop %v341
        %vm345 = vweird.f32 %v252
        %v346 = vadd.s32 %v342, 3
        %v347 = vand.u32 %v346, 3
        %vm348 = vcmp.lt.s32.totalorder %v347, 2
        %vm349 = vcmp.eq.s32.totalorder %v347, 0
        %v350 = vxor.u32 %v344, 2147483648
        %v351 = vsel %vm349, %v343, %v350
        %vm352 = vcmp.eq.s32.totalorder %v347, 2
        %v353 = vxor.u32 %v343, 2147483648
        %v354 = vsel %vm352, %v353, %v344
        %v355 = vsel %vm348, %v351, %v354
        %v356 = vsel %vm345, nan, %v355
        %v357 = vld [vmem:[%s2] sm:$0x1]
        %358 = vset.pattern.permute.xlu0 0
        %359 = vperm.xlu0 %358, %v235
        %v360 = vpop.permute.xlu0 %359
        %v363 = vlaneseq
        %v364 = vshrl.u32 %v363, 7
        %v365 = vsub.s32 0, %v364
        %v366 = vrot.slane %v357, %v365
        %v368 = vmul.f32 %v360, %v366
        %v369 = vld [vmem:[%s3] sm:$0x1]
        %v371 = vlaneseq
        %v372 = vshrl.u32 %v371, 7
        %v373 = vsub.s32 0, %v372
        %v374 = vrot.slane %v369, %v373
        %v376 = vadd.f32 %v368, %v374
        %v377 = vld [vmem:[#allocation2] sm:$0xff]
        %v378 = vld [vmem:[#allocation2 + $0x8] sm:$0xff]
        %v379 = vld [vmem:[#allocation2 + $0x10] sm:$0xff]
        %v380 = vld [vmem:[#allocation2 + $0x18] sm:$0xff]
        %vm381 = vcmask 261120
        %v383 = vsel %vm381, %v356, 0
        %385 = vmatprep.subr.mxu0 0.0
        %386 = vmatpush1.msra.mxu0 0.0
        %387 = vmatprep.subr.mxu0 0.0
        %388 = vmatpush1.msra.mxu0 0.0
        %389 = vmatprep.subr.mxu0 0.0
        %390 = vmatpush1.msra.mxu0 0.0
        %391 = vmatprep.subr.mxu0 0.0
        %392 = vmatpush1.msra.mxu0 0.0
        %393 = vmatprep.subr.mxu0 0.0
        %394 = vmatpush1.msra.mxu0 0.0
        %395 = vmatprep.subr.mxu0 0.0
        %396 = vmatpush1.msra.mxu0 0.0
        %397 = vmatprep.subr.mxu0 0.0
        %398 = vmatpush1.msra.mxu0 0.0
        %399 = vmatprep.subr.mxu0 0.0
        %400 = vmatpush1.msra.mxu0 0.0
        %401 = vmatprep.subr.mxu0 0.0
        %402 = vmatpush1.msra.mxu0 0.0
        %403 = vmatprep.subr.mxu0 0.0
        %404 = vmatpush1.msra.mxu0 0.0
        %405 = vmatprep.subr.mxu0 0.0
        %406 = vmatpush1.msra.mxu0 0.0
        %407 = vmatprep.subr.mxu0 0.0
        %408 = vmatpush1.msra.mxu0 0.0
        %409 = vmatprep.subr.mxu0 0.0
        %410 = vmatpush1.msra.mxu0 %v380
        %411 = vmatprep.subr.mxu0 0.0
        %412 = vmatpush1.msra.mxu0 %v379
        %413 = vmatprep.subr.mxu0 0.0
        %414 = vmatpush1.msra.mxu0 %v378
        %415 = vmatprep.subr.mxu0 0.0
        %416 = vmatpush1.msra.mxu0 %v377
        %417 = vmatprep.subr.mxu0 0.0
        %418 = vmatpush2.msra.mxu0 0.0
        %419 = vmatprep.subr.mxu0 0.0
        %420 = vmatpush2.msra.mxu0 0.0
        %421 = vmatprep.subr.mxu0 0.0
        %422 = vmatpush2.msra.mxu0 0.0
        %423 = vmatprep.subr.mxu0 0.0
        %424 = vmatpush2.msra.mxu0 0.0
        %425 = vmatprep.subr.mxu0 0.0
        %426 = vmatpush2.msra.mxu0 0.0
        %427 = vmatprep.subr.mxu0 0.0
        %428 = vmatpush2.msra.mxu0 0.0
        %429 = vmatprep.subr.mxu0 0.0
        %430 = vmatpush2.msra.mxu0 0.0
        %431 = vmatprep.subr.mxu0 0.0
        %432 = vmatpush2.msra.mxu0 0.0
        %433 = vmatprep.subr.mxu0 0.0
        %434 = vmatpush2.msra.mxu0 0.0
        %435 = vmatprep.subr.mxu0 0.0
        %436 = vmatpush2.msra.mxu0 0.0
        %437 = vmatprep.subr.mxu0 0.0
        %438 = vmatpush2.msra.mxu0 0.0
        %439 = vmatprep.subr.mxu0 0.0
        %440 = vmatpush2.msra.mxu0 0.0
        %441 = vmatprep.subr.mxu0 0.0
        %442 = vmatpush2.msra.mxu0 0.0
        %443 = vmatprep.subr.mxu0 0.0
        %444 = vmatpush2.msra.mxu0 0.0
        %445 = vmatprep.subr.mxu0 0.0
        %446 = vmatpush2.msra.mxu0 0.0
        %447 = vmatprep.subr.mxu0 0.0
        %448 = vmatpush2.msra.mxu0 0.0
        %449 = vmatprep.mubr.f32.mxu0 0.0
        %450 = vmatmul.mubr.f32.gmra.mxu0 %v383
        %v451 = vpop.f32.mrf.mxu0
        %v452 = vadd.f32 0.0, %v451
        %v453 = vpop.f32.mrf.mxu0
        %454 = vdwg.mxu0
        %v455 = vmul.f32 %v376, %v452
        %457 = vrot.lane.b32.xlu0 %v452, 64
        %v458 = vpop.permute.xlu0 %457
        %v460 = vadd.f32 %v455, %v458
        %vm461 = vcmask 523264
        %462 = vst.msk [vmem:[%s230] sm:$0xff] %vm461, %v460
        %s463 = sand.u32 %s138, 1
        %s464 = scalar_lea.sflag [#allocation4], %s463
        %s465 = sand.u32 %s138, 1
        %s466 = smul.addr %s465, 8
        %s467 = scalar_lea.vmem [#allocation5], %s466
        // Predicated region
        $region45: #{tpu_custom_call.1} parent=39 // pred_check
          %p468 = pneg %p148
        $region46: #{tpu_custom_call.1} parent=39 // pred_check_branch
          %470 = sbr.rel (%p468) target = $region48
        $region47: #{tpu_custom_call.1} parent=39 // pred_region
          %s472 = ssub.s32 128, 128
          %473 = vsyncadd %s464, %s472
          %s474 = smul.addr %s20, 128
          %s475 = scalar_lea.hbm %s5, %s474
          %s477 = sshll.u32 %s467, 4
          %s478 = int_to_ptr.vmem [resolvable:$true] %s477
          %480 = dma.vmem_to_hbm [thread:$0]  %s478, 128, %s475, %s464
        $region48: #{tpu_custom_call.1} parent=39 // pred_fallthru
          _
      $region40: #{tpu_custom_call.1} parent=5 // pred_fallthru
        _
      %p481 = scmp.le.s32.totalorder 2, %s15
      // Predicated region
      $region49: #{tpu_custom_call.1} parent=5 // pred_check
        %p482 = pneg %p481
      $region50: #{tpu_custom_call.1} parent=5 // pred_check_branch
        %484 = sbr.rel (%p482) target = $region52
      $region51: #{tpu_custom_call.1} parent=5 // pred_region
        %s485 = ssub.s32 %s15, 2
        // Predicated region
        $region53: #{tpu_custom_call.1} parent=51 // pred_check
          %p486 = pneg %p154
        $region54: #{tpu_custom_call.1} parent=51 // pred_check_branch
          %488 = sbr.rel (%p486) target = $region56
        $region55: #{tpu_custom_call.1} parent=51 // pred_region
          %s489 = sand.u32 %s139, 1
          %s490 = scalar_lea.sflag [#allocation4], %s489
          %s491 = sand.u32 %s139, 1
          %s492 = smul.addr %s491, 8
          %s493 = scalar_lea.vmem [#allocation5], %s492
          %494 = dma.done %s490, 128
        $region56: #{tpu_custom_call.1} parent=51 // pred_fallthru
          _
      $region52: #{tpu_custom_call.1} parent=5 // pred_fallthru
        _
    $region6: #{tpu_custom_call.1} parent=1 // loop_footer
      %s19 = sadd.s32 1, %s15
    $region7: #{tpu_custom_call.1} parent=1 // loop_footer_branch
      %14 = sbr.rel target = $region3
    $region8: #{tpu_custom_call.1} parent=1 // loop_exit
      _
    %495 = vsyncpa [#allocation3], 1
    %s496 = scalar_lea.sflag [#allocation3], 1
    %497 = vsyncpa %s496, 1
    %498 = vsyncpa [#allocation4], 1
    %s499 = scalar_lea.sflag [#allocation4], 1
    %500 = vsyncpa %s499, 1

</llo_original>
